<compile_context>
chip_gen: v7x
topology: tpu7x:2x2x1
jax: 0.10.0
libtpu: 0.0.40
codegen_flags: <defaults>
</compile_context>

<pallas_src>
import jax
import jax.numpy as jnp
from jax import lax
from jax.experimental import pallas as pl
from jax.experimental.pallas import tpu as pltpu

KT = 2 * 2 * 2  # taps of a kernel_size=2 3-D transposed conv


def _deconv2x_kernel(x_ref, w_ref, b_ref, o_ref):
    """One grid step: (TM, Cin) @ (Cin, Cp) + bias -> (TM, Cp).

    x_ref : (TM, Cin)  activations (compute dtype)
    w_ref : (Cin, Cp)  packed weights, columns ordered (kd, kh, kw, co) [zero-padded]
    b_ref : (1, Cp)    bias tiled per tap, float32
    o_ref : (TM, Cp)   output slab (output dtype), lane-dense
    """
    y = jnp.dot(x_ref[...], w_ref[...], preferred_element_type=jnp.float32)
    o_ref[...] = (y + b_ref[...]).astype(o_ref.dtype)


def _round_up(x, m):
    return (x + m - 1) // m * m


def _vmem_capacity_bytes():
    """Physical VMEM per core; conservative 64 MiB (v7x) fallback."""
    try:
        cap = int(getattr(pltpu.get_tpu_info(), "vmem_capacity_bytes", 0))
        if cap > 0:
            return cap
    except Exception:
        pass
    return 64 * 1024 * 1024


def _select_row_tile(m, row_in_bytes, row_out_bytes, resident_w_bytes, vmem_cap,
                     max_tile=8192, align=16):
    """Largest aligned row tile whose double-buffered blocks fit the VMEM budget."""
    budget = int(vmem_cap * 0.40) - resident_w_bytes
    budget = max(budget, 1 << 20)
    per_row = 2 * (row_in_bytes + row_out_bytes)          # double-buffered in + out
    tm = max(align, budget // max(per_row, 1))
    tm = min(tm, max_tile, _round_up(m, align))
    if tm >= 1024:
        tm = (tm // 256) * 256
    else:
        tm = max(align, (tm // align) * align)
    return tm


def up_conv_forward(x_ncdhw, w, b, *, compute_dtype=jnp.bfloat16,
                    output_dtype=jnp.float32, max_row_tile=8192):
    """ConvTranspose3d(ch_in, ch_out, kernel_size=2, stride=2) forward.

    x_ncdhw : (N, Cin, D, H, W)    float32, PyTorch NCDHW layout
    w       : (Cin, Cout, 2, 2, 2) float32, PyTorch ConvTranspose3d weight layout
    b       : (Cout,)              float32
    returns : (N, Cout, 2D, 2H, 2W) in output_dtype
    """
    N, Cin, D, H, W = x_ncdhw.shape
    Cout = w.shape[1]
    M = N * D * H * W
    cols = KT * Cout

    # Pad packed columns to the next 128-lane boundary when the byte overhead is small
    # (unmasked vst); otherwise accept masked stores on the odd-Cout path.
    cols_p = _round_up(cols, 128)
    if cols_p > cols and cols_p * 4 > cols * 5:  # > 25% overhead
        cols_p = cols

    # Cast first, then NCDHW -> rows (n,d,h,w) with channels on the lane axis.
    x_rows = jnp.transpose(x_ncdhw.astype(compute_dtype),
                           (0, 2, 3, 4, 1)).reshape(M, Cin)

    # Weights: (Cin, Cout, kd, kh, kw) -> (Cin, kd, kh, kw, Cout) -> (Cin, 8*Cout).
    w_packed = jnp.transpose(w, (0, 2, 3, 4, 1)).reshape(Cin, cols).astype(compute_dtype)
    # Bias tiled per tap, kept f32 (added after the f32 accumulation).
    b_packed = jnp.tile(b.astype(jnp.float32), KT).reshape(1, cols)
    if cols_p > cols:
        w_packed = jnp.pad(w_packed, ((0, 0), (0, cols_p - cols)))
        b_packed = jnp.pad(b_packed, ((0, 0), (0, cols_p - cols)))

    in_item = jnp.dtype(compute_dtype).itemsize
    out_item = jnp.dtype(output_dtype).itemsize
    vmem_cap = _vmem_capacity_bytes()
    w_bytes = 2 * Cin * cols_p * in_item + cols_p * 4     # weight + bias residents
    TM = _select_row_tile(M, Cin * in_item, cols_p * out_item, w_bytes, vmem_cap,
                          max_tile=max_row_tile)

    grid_m = pl.cdiv(M, TM)
    M_pad = grid_m * TM
    if M_pad > M:
        x_rows = jnp.pad(x_rows, ((0, M_pad - M), (0, 0)))

    est_vmem = 2 * TM * (Cin * in_item + cols_p * out_item) + w_bytes + (1 << 20)
    vmem_limit = max(32 << 20, min(int(vmem_cap * 0.70), est_vmem + (16 << 20)))

    cost = None
    if hasattr(pl, "CostEstimate"):
        cost = pl.CostEstimate(
            flops=2 * M_pad * Cin * cols_p,
            transcendentals=0,
            bytes_accessed=M_pad * (Cin * in_item + cols_p * out_item) + w_bytes)

    out = pl.pallas_call(
        _deconv2x_kernel,
        out_shape=jax.ShapeDtypeStruct((M_pad, cols_p), output_dtype),
        grid_spec=pltpu.PrefetchScalarGridSpec(
            num_scalar_prefetch=0,
            grid=(grid_m,),
            in_specs=[
                pl.BlockSpec((TM, Cin), lambda i: (i, 0)),
                pl.BlockSpec((Cin, cols_p), lambda i: (0, 0)),
                pl.BlockSpec((1, cols_p), lambda i: (0, 0)),
            ],
            out_specs=pl.BlockSpec((TM, cols_p), lambda i: (i, 0)),
        ),
        compiler_params=pltpu.CompilerParams(
            dimension_semantics=("parallel",),
            vmem_limit_bytes=int(vmem_limit),
        ),
        cost_estimate=cost,
    )(x_rows, w_packed, b_packed)

    out = out[:M, :cols]
    # (M, 8*Cout) -> (N, D, H, W, kd, kh, kw, Cout) -> (N, Cout, D, kd, H, kh, W, kw)
    # -> (N, Cout, 2D, 2H, 2W).  Single wrapper-side layout pass, inherent to NCDHW.
    y = out.reshape(N, D, H, W, 2, 2, 2, Cout)
    y = jnp.transpose(y, (0, 7, 1, 4, 2, 5, 3, 6))
    return y.reshape(N, Cout, 2 * D, 2 * H, 2 * W)


def _reference_forward(x_ncdhw, w, b):
    """Pure-JAX reference for ConvTranspose3d(k=2, s=2), exact f32 math."""
    N, Cin, D, H, W = x_ncdhw.shape
    Cout = w.shape[1]
    y = jnp.einsum("nidhw,iokpq->nodkhpwq", x_ncdhw, w,
                   precision=lax.Precision.HIGHEST)
    y = y.reshape(N, Cout, 2 * D, 2 * H, 2 * W)
    return y + b.reshape(1, Cout, 1, 1, 1)


if __name__ == "__main__":
    key = jax.random.PRNGKey(0)
    fwd = jax.jit(up_conv_forward,
                  static_argnames=("compute_dtype", "output_dtype", "max_row_tile"))

    # ---- config 1: lane-dense output (8*Cout == 128), bf16 MXU, f32 writeback ----
    N, CIN, COUT, D, H, W = 2, 4, 16, 8, 8, 8
    k1, k2, k3, key = jax.random.split(key, 4)
    x = jax.random.normal(k1, (N, CIN, D, H, W), jnp.float32)
    w = 0.1 * jax.random.normal(k2, (CIN, COUT, 2, 2, 2), jnp.float32)
    b = 0.1 * jax.random.normal(k3, (COUT,), jnp.float32)

    out = jax.block_until_ready(fwd(x, w, b))
    assert out.shape == (N, COUT, 2 * D, 2 * H, 2 * W), out.shape
    ref = _reference_forward(x.astype(jnp.bfloat16).astype(jnp.float32),
                             w.astype(jnp.bfloat16).astype(jnp.float32), b)
    err = float(jnp.max(jnp.abs(out - ref)))
    if err > 1e-3:
        raise AssertionError(f"bf16-compute / f32-out path mismatch, max abs err = {err}")

    # ---- config 1b: bf16 writeback (halves the store-bound HBM pass) -------------
    out_bf = jax.block_until_ready(fwd(x, w, b, output_dtype=jnp.bfloat16))
    assert out_bf.dtype == jnp.bfloat16
    err_bf = float(jnp.max(jnp.abs(out_bf.astype(jnp.float32) - ref)))
    if err_bf > 5e-2:
        raise AssertionError(f"bf16-out path mismatch, max abs err = {err_bf}")

    # ---- config 2: unaligned channel counts / odd spatial sizes, f32 path --------
    N2, CIN2, COUT2, D2, H2, W2 = 1, 6, 5, 4, 6, 5
    k1, k2, k3, key = jax.random.split(key, 4)
    x2 = jax.random.normal(k1, (N2, CIN2, D2, H2, W2), jnp.float32)
    w2 = 0.1 * jax.random.normal(k2, (CIN2, COUT2, 2, 2, 2), jnp.float32)
    b2 = 0.1 * jax.random.normal(k3, (COUT2,), jnp.float32)

    out2 = jax.block_until_ready(fwd(x2, w2, b2, compute_dtype=jnp.float32))
    assert out2.shape == (N2, COUT2, 2 * D2, 2 * H2, 2 * W2), out2.shape
    ref2 = _reference_forward(x2, w2, b2)
    err2 = float(jnp.max(jnp.abs(out2 - ref2)))
    if err2 > 1e-3:
        raise AssertionError(f"f32 path mismatch, max abs err = {err2}")

    print("KERNEL_OK")
</pallas_src>

<mosaic_0001>
module attributes {stable_mosaic.version = 11 : i64} {
  func.func @_deconv2x_kernel(%arg0: i32, %arg1: memref<1024x4xbf16, #tpu.memory_space<vmem>>, %arg2: memref<4x128xbf16, #tpu.memory_space<vmem>>, %arg3: memref<1x128xf32, #tpu.memory_space<vmem>>, %arg4: memref<1024x128xf32, #tpu.memory_space<vmem>>) attributes {dimension_semantics = [#tpu.dimension_semantics<parallel>], iteration_bounds = array<i64: 1>, scalar_prefetch = 0 : i64, scratch_operands = 0 : i64, tpu.core_type = #tpu.core_type<tc>, window_params = [{transform_indices = @transform_0, window_bounds = array<i64: 1024, 4>}, {pipeline_mode = #tpu.pipeline_mode<synchronous>, transform_indices = @transform_1, window_bounds = array<i64: 4, 128>}, {pipeline_mode = #tpu.pipeline_mode<synchronous>, transform_indices = @transform_2, window_bounds = array<i64: 1, 128>}, {transform_indices = @transform_3, window_bounds = array<i64: 1024, 128>}]} {
    %c0 = arith.constant 0 : index
    %c0_0 = arith.constant 0 : index
    %0 = vector.load %arg1[%c0, %c0_0] : memref<1024x4xbf16, #tpu.memory_space<vmem>>, vector<1024x4xbf16>
    %c0_1 = arith.constant 0 : index
    %c0_2 = arith.constant 0 : index
    %1 = vector.load %arg2[%c0_1, %c0_2] : memref<4x128xbf16, #tpu.memory_space<vmem>>, vector<4x128xbf16>
    %cst = arith.constant dense<0.000000e+00> : vector<1024x128xf32>
    %2 = tpu.matmul %0, %1, %cst {dimension_numbers = #tpu.dot_dimension_numbers<[1], [0], [0], [1], [0, 0, 1, 1], [], []>} : vector<1024x4xbf16>, vector<4x128xbf16>, vector<1024x128xf32> -> vector<1024x128xf32>
    %c0_3 = arith.constant 0 : index
    %c0_4 = arith.constant 0 : index
    %3 = vector.load %arg3[%c0_3, %c0_4] : memref<1x128xf32, #tpu.memory_space<vmem>>, vector<1x128xf32>
    %4 = vector.broadcast %3 : vector<1x128xf32> to vector<1024x128xf32>
    %5 = arith.addf %2, %4 : vector<1024x128xf32>
    %c0_5 = arith.constant 0 : index
    %c0_6 = arith.constant 0 : index
    %6 = vector.load %arg4[%c0_5, %c0_6] : memref<1024x128xf32, #tpu.memory_space<vmem>>, vector<1024x128xf32>
    tpu.vector_store %arg4[%c0_5, %c0_6], %5 {strides = array<i32>} : memref<1024x128xf32, #tpu.memory_space<vmem>>, vector<1024x128xf32>,
    return
  }
  func.func @transform_0(%arg0: i32) -> (i32, i32) {
    %c0_i32 = arith.constant 0 : i32
    %c0_i32_0 = arith.constant 0 : i32
    return %arg0, %c0_i32 : i32, i32
  }
  func.func @transform_1(%arg0: i32) -> (i32, i32) {
    %c0_i32 = arith.constant 0 : i32
    %c0_i32_0 = arith.constant 0 : i32
    %c0_i32_1 = arith.constant 0 : i32
    return %c0_i32, %c0_i32_0 : i32, i32
  }
  func.func @transform_2(%arg0: i32) -> (i32, i32) {
    %c0_i32 = arith.constant 0 : i32
    %c0_i32_0 = arith.constant 0 : i32
    %c0_i32_1 = arith.constant 0 : i32
    return %c0_i32, %c0_i32_0 : i32, i32
  }
  func.func @transform_3(%arg0: i32) -> (i32, i32) {
    %c0_i32 = arith.constant 0 : i32
    %c0_i32_0 = arith.constant 0 : i32
    return %arg0, %c0_i32 : i32, i32
  }
}

</mosaic_0001>

<llo_original>
// kernel: tile.9
$region0: #{tile.9}
  %s0 = inlined_call_operand.vmem [shape: f32[8,16], index: 0, kind: input, shape index: {}]
  %s1 = inlined_call_operand.vmem [shape: f32[1,128], index: 1, kind: output, shape index: {}]
  $region1: #{tile.9} parent=0
    #allocation0 [shape = 'u8[4096]{0}', space=vmem, size = 0x1000, scoped, tag = 'scoped mem for output reshape']
    %v2 = vld [vmem:[%s0] sm:$0x1]
    %vm3 = vcmask 130048
    %4 = vst.msk [vmem:[#allocation0] sm:$0x1] %vm3, %v2
    %s5 = scalar_lea.vmem %s0, 7
    %v6 = vld [vmem:[%s5] sm:$0x1]
    %7 = vrot.lane.b32.xlu0 %v6, 112
    %v8 = vpop.permute.xlu0 %7
    %vm9 = vcmask 1048448
    %10 = vst.msk [vmem:[#allocation0] sm:$0x1] %vm9, %v8
    %s11 = scalar_lea.vmem %s0, 6
    %v12 = vld [vmem:[%s11] sm:$0x1]
    %13 = vrot.lane.b32.xlu0 %v12, 96
    %v14 = vpop.permute.xlu0 %13
    %vm15 = vcmask 917248
    %16 = vst.msk [vmem:[#allocation0] sm:$0x1] %vm15, %v14
    %s17 = scalar_lea.vmem %s0, 5
    %v18 = vld [vmem:[%s17] sm:$0x1]
    %19 = vrot.lane.b32.xlu0 %v18, 80
    %v20 = vpop.permute.xlu0 %19
    %vm21 = vcmask 786048
    %22 = vst.msk [vmem:[#allocation0] sm:$0x1] %vm21, %v20
    %s23 = scalar_lea.vmem %s0, 4
    %v24 = vld [vmem:[%s23] sm:$0x1]
    %25 = vrot.lane.b32.xlu0 %v24, 64
    %v26 = vpop.permute.xlu0 %25
    %vm27 = vcmask 654848
    %28 = vst.msk [vmem:[#allocation0] sm:$0x1] %vm27, %v26
    %s29 = scalar_lea.vmem %s0, 3
    %v30 = vld [vmem:[%s29] sm:$0x1]
    %31 = vrot.lane.b32.xlu0 %v30, 48
    %v32 = vpop.permute.xlu0 %31
    %vm33 = vcmask 523648
    %34 = vst.msk [vmem:[#allocation0] sm:$0x1] %vm33, %v32
    %s35 = scalar_lea.vmem %s0, 2
    %v36 = vld [vmem:[%s35] sm:$0x1]
    %37 = vrot.lane.b32.xlu0 %v36, 32
    %v38 = vpop.permute.xlu0 %37
    %vm39 = vcmask 392448
    %40 = vst.msk [vmem:[#allocation0] sm:$0x1] %vm39, %v38
    %s41 = scalar_lea.vmem %s0, 1
    %v42 = vld [vmem:[%s41] sm:$0x1]
    %43 = vrot.lane.b32.xlu0 %v42, 16
    %v44 = vpop.permute.xlu0 %43
    %vm45 = vcmask 261248
    %46 = vst.msk [vmem:[#allocation0] sm:$0x1] %vm45, %v44
    %s48 = sshllo.u32 0, 1
    %v50 = vld [vmem:[#allocation0] sm:%s48]
    %s51 = sshllo.u32 0, 1
    %52 = vst [vmem:[%s1] sm:%s51] %v50

// kernel: tile.8
$region0: #{tile.8}
  #allocation2 [shape = 's32[1]{0}', space=sflag, size = 0x4, scoped, tag = 'scoped memory for tile.8']
  %s0 = inlined_call_operand.hbm [shape: f32[16], index: 0, kind: input, shape index: {}]
  %s1 = inlined_call_operand.vmem [shape: f32[8,16], index: 1, kind: output, shape index: {}]
  $region1: #{tile.8} parent=0
    #allocation0 [shape = 'u8[512]{0}', space=vmem, size = 0x400, scoped, tag = 'operand span for operand 0']
    #allocation1 [shape = 's32[1]{0}', space=sflag, size = 0x4, scoped, tag = 'scoped memory for tile.8']
    %2 = vsyncpa [#allocation1], 0
    // Predicated region
    $region2: #{tile.8} parent=1 // pred_check
      _
    $region3: #{tile.8} parent=1 // pred_check_branch
      %4 = sbr.rel (0) target = $region5
    $region4: #{tile.8} parent=1 // pred_region
      %s6 = ssub.s32 16, 16
      %7 = vsyncadd [#allocation1], %s6
      %s9 = sshll.u32 [#allocation0], 4
      %s10 = int_to_ptr.vmem [resolvable:$true] %s9
      %12 = dma.hbm_to_vmem [thread:$0]  %s0, 16, %s10, [#allocation1]
    $region5: #{tile.8} parent=1 // pred_fallthru
      _
    // Predicated region
    $region6: #{tile.8} parent=1 // pred_check
      _
    $region7: #{tile.8} parent=1 // pred_check_branch
      %14 = sbr.rel (0) target = $region9
    $region8: #{tile.8} parent=1 // pred_region
      %15 = dma.done [#allocation1], 16
    $region9: #{tile.8} parent=1 // pred_fallthru
      _
    %v16 = vld [vmem:[#allocation0] ss:$0 sm:$0xff]
    %17 = vst [vmem:[%s1] sm:$0xff] %v16
    %18 = vsyncpa [#allocation1], 1

// kernel: up_conv_forward.1
$region0: #{up_conv_forward.1}
  #allocation0 [shape = 'u32[]', space=smem, size = 0x4, offset = 0x4, fixed_abs, tag = 'smem constant byte address 0x4 - core index']
  #allocation1 [shape = 'u32[144,128]{1,0:T(1,128)}', space=vmem, size = 0x12000, scoped, tag = 'internal scratch']
  %s0 = inlined_call_operand.vmem [shape: bf16[1024,4], index: 0, kind: input, shape index: {}]
  %s1 = inlined_call_operand.vmem [shape: bf16[4,128], index: 1, kind: input, shape index: {}]
  %s2 = inlined_call_operand.vmem [shape: f32[1,128], index: 2, kind: input, shape index: {}]
  %s3 = inlined_call_operand.vmem [shape: f32[1024,128], index: 3, kind: output, shape index: {}]
  %s4 = sld [smem:[#allocation0]]
  $region22: #{up_conv_forward.1} parent=0
    _
  %s6 = ssub.s32 1, %s4
  %s7 = scalar_select 0, %s6, %s4
  // Predicated region
  $region2: #{up_conv_forward.1} parent=0 // pred_check
    _
  $region3: #{up_conv_forward.1} parent=0 // pred_check_branch
    %9 = sbr.rel (0) target = $region5
  $region4: #{up_conv_forward.1} parent=0 // pred_region
    _
  $region5: #{up_conv_forward.1} parent=0 // pred_fallthru
    _
  // Predicated region
  $region6: #{up_conv_forward.1} parent=0 // pred_check
    _
  $region7: #{up_conv_forward.1} parent=0 // pred_check_branch
    %11 = sbr.rel (0) target = $region9
  $region8: #{up_conv_forward.1} parent=0 // pred_region
    _
  $region9: #{up_conv_forward.1} parent=0 // pred_fallthru
    _
  // Predicated region
  $region10: #{up_conv_forward.1} parent=0 // pred_check
    _
  $region11: #{up_conv_forward.1} parent=0 // pred_check_branch
    %13 = sbr.rel (0) target = $region13
  $region12: #{up_conv_forward.1} parent=0 // pred_region
    _
  $region13: #{up_conv_forward.1} parent=0 // pred_fallthru
    _
  %v15 = vld [vmem:[%s0] sm:$0xf]
  %v16 = vld [vmem:[%s0 + $0x4] sm:$0xf]
  %v17 = vld [vmem:[%s0 + $0x8] sm:$0xf]
  %v18 = vld [vmem:[%s0 + $0xc] sm:$0xf]
  %v19 = vld [vmem:[%s0 + $0x10] sm:$0xf]
  %v20 = vld [vmem:[%s0 + $0x14] sm:$0xf]
  %v21 = vld [vmem:[%s0 + $0x18] sm:$0xf]
  %v22 = vld [vmem:[%s0 + $0x1c] sm:$0xf]
  %v23 = vld [vmem:[%s0 + $0x20] sm:$0xf]
  %v24 = vld [vmem:[%s0 + $0x24] sm:$0xf]
  %v25 = vld [vmem:[%s0 + $0x28] sm:$0xf]
  %v26 = vld [vmem:[%s0 + $0x2c] sm:$0xf]
  %v27 = vld [vmem:[%s0 + $0x30] sm:$0xf]
  %v28 = vld [vmem:[%s0 + $0x34] sm:$0xf]
  %v29 = vld [vmem:[%s0 + $0x38] sm:$0xf]
  %v30 = vld [vmem:[%s0 + $0x3c] sm:$0xf]
  %v31 = vld [vmem:[%s0 + $0x40] sm:$0xf]
  %v32 = vld [vmem:[%s0 + $0x44] sm:$0xf]
  %v33 = vld [vmem:[%s0 + $0x48] sm:$0xf]
  %v34 = vld [vmem:[%s0 + $0x4c] sm:$0xf]
  %v35 = vld [vmem:[%s0 + $0x50] sm:$0xf]
  %v36 = vld [vmem:[%s0 + $0x54] sm:$0xf]
  %v37 = vld [vmem:[%s0 + $0x58] sm:$0xf]
  %v38 = vld [vmem:[%s0 + $0x5c] sm:$0xf]
  %v39 = vld [vmem:[%s0 + $0x60] sm:$0xf]
  %v40 = vld [vmem:[%s0 + $0x64] sm:$0xf]
  %v41 = vld [vmem:[%s0 + $0x68] sm:$0xf]
  %v42 = vld [vmem:[%s0 + $0x6c] sm:$0xf]
  %v43 = vld [vmem:[%s0 + $0x70] sm:$0xf]
  %v44 = vld [vmem:[%s0 + $0x74] sm:$0xf]
  %v45 = vld [vmem:[%s0 + $0x78] sm:$0xf]
  %v46 = vld [vmem:[%s0 + $0x7c] sm:$0xf]
  %v47 = vld [vmem:[%s0 + $0x80] sm:$0xf]
  %v48 = vld [vmem:[%s0 + $0x84] sm:$0xf]
  %v49 = vld [vmem:[%s0 + $0x88] sm:$0xf]
  %v50 = vld [vmem:[%s0 + $0x8c] sm:$0xf]
  %v51 = vld [vmem:[%s0 + $0x90] sm:$0xf]
  %v52 = vld [vmem:[%s0 + $0x94] sm:$0xf]
  %v53 = vld [vmem:[%s0 + $0x98] sm:$0xf]
  %v54 = vld [vmem:[%s0 + $0x9c] sm:$0xf]
  %v55 = vld [vmem:[%s0 + $0xa0] sm:$0xf]
  %v56 = vld [vmem:[%s0 + $0xa4] sm:$0xf]
  %v57 = vld [vmem:[%s0 + $0xa8] sm:$0xf]
  %v58 = vld [vmem:[%s0 + $0xac] sm:$0xf]
  %v59 = vld [vmem:[%s0 + $0xb0] sm:$0xf]
  %v60 = vld [vmem:[%s0 + $0xb4] sm:$0xf]
  %v61 = vld [vmem:[%s0 + $0xb8] sm:$0xf]
  %v62 = vld [vmem:[%s0 + $0xbc] sm:$0xf]
  %v63 = vld [vmem:[%s0 + $0xc0] sm:$0xf]
  %v64 = vld [vmem:[%s0 + $0xc4] sm:$0xf]
  %v65 = vld [vmem:[%s0 + $0xc8] sm:$0xf]
  %v66 = vld [vmem:[%s0 + $0xcc] sm:$0xf]
  %v67 = vld [vmem:[%s0 + $0xd0] sm:$0xf]
  %v68 = vld [vmem:[%s0 + $0xd4] sm:$0xf]
  %v69 = vld [vmem:[%s0 + $0xd8] sm:$0xf]
  %v70 = vld [vmem:[%s0 + $0xdc] sm:$0xf]
  %v71 = vld [vmem:[%s0 + $0xe0] sm:$0xf]
  %v72 = vld [vmem:[%s0 + $0xe4] sm:$0xf]
  %v73 = vld [vmem:[%s0 + $0xe8] sm:$0xf]
  %v74 = vld [vmem:[%s0 + $0xec] sm:$0xf]
  %v75 = vld [vmem:[%s0 + $0xf0] sm:$0xf]
  %v76 = vld [vmem:[%s0 + $0xf4] sm:$0xf]
  %v77 = vld [vmem:[%s0 + $0xf8] sm:$0xf]
  %v78 = vld [vmem:[%s0 + $0xfc] sm:$0xf]
  %v79 = vld [vmem:[%s0 + $0x100] sm:$0xf]
  %v80 = vld [vmem:[%s0 + $0x104] sm:$0xf]
  %v81 = vld [vmem:[%s0 + $0x108] sm:$0xf]
  %v82 = vld [vmem:[%s0 + $0x10c] sm:$0xf]
  %v83 = vld [vmem:[%s0 + $0x110] sm:$0xf]
  %v84 = vld [vmem:[%s0 + $0x114] sm:$0xf]
  %v85 = vld [vmem:[%s0 + $0x118] sm:$0xf]
  %v86 = vld [vmem:[%s0 + $0x11c] sm:$0xf]
  %v87 = vld [vmem:[%s0 + $0x120] sm:$0xf]
  %v88 = vld [vmem:[%s0 + $0x124] sm:$0xf]
  %v89 = vld [vmem:[%s0 + $0x128] sm:$0xf]
  %v90 = vld [vmem:[%s0 + $0x12c] sm:$0xf]
  %v91 = vld [vmem:[%s0 + $0x130] sm:$0xf]
  %v92 = vld [vmem:[%s0 + $0x134] sm:$0xf]
  %v93 = vld [vmem:[%s0 + $0x138] sm:$0xf]
  %v94 = vld [vmem:[%s0 + $0x13c] sm:$0xf]
  %v95 = vld [vmem:[%s0 + $0x140] sm:$0xf]
  %v96 = vld [vmem:[%s0 + $0x144] sm:$0xf]
  %v97 = vld [vmem:[%s0 + $0x148] sm:$0xf]
  %v98 = vld [vmem:[%s0 + $0x14c] sm:$0xf]
  %v99 = vld [vmem:[%s0 + $0x150] sm:$0xf]
  %v100 = vld [vmem:[%s0 + $0x154] sm:$0xf]
  %v101 = vld [vmem:[%s0 + $0x158] sm:$0xf]
  %v102 = vld [vmem:[%s0 + $0x15c] sm:$0xf]
  %v103 = vld [vmem:[%s0 + $0x160] sm:$0xf]
  %v104 = vld [vmem:[%s0 + $0x164] sm:$0xf]
  %v105 = vld [vmem:[%s0 + $0x168] sm:$0xf]
  %v106 = vld [vmem:[%s0 + $0x16c] sm:$0xf]
  %v107 = vld [vmem:[%s0 + $0x170] sm:$0xf]
  %v108 = vld [vmem:[%s0 + $0x174] sm:$0xf]
  %v109 = vld [vmem:[%s0 + $0x178] sm:$0xf]
  %v110 = vld [vmem:[%s0 + $0x17c] sm:$0xf]
  %v111 = vld [vmem:[%s0 + $0x180] sm:$0xf]
  %v112 = vld [vmem:[%s0 + $0x184] sm:$0xf]
  %v113 = vld [vmem:[%s0 + $0x188] sm:$0xf]
  %v114 = vld [vmem:[%s0 + $0x18c] sm:$0xf]
  %v115 = vld [vmem:[%s0 + $0x190] sm:$0xf]
  %v116 = vld [vmem:[%s0 + $0x194] sm:$0xf]
  %v117 = vld [vmem:[%s0 + $0x198] sm:$0xf]
  %v118 = vld [vmem:[%s0 + $0x19c] sm:$0xf]
  %v119 = vld [vmem:[%s0 + $0x1a0] sm:$0xf]
  %v120 = vld [vmem:[%s0 + $0x1a4] sm:$0xf]
  %v121 = vld [vmem:[%s0 + $0x1a8] sm:$0xf]
  %v122 = vld [vmem:[%s0 + $0x1ac] sm:$0xf]
  %v123 = vld [vmem:[%s0 + $0x1b0] sm:$0xf]
  %v124 = vld [vmem:[%s0 + $0x1b4] sm:$0xf]
  %v125 = vld [vmem:[%s0 + $0x1b8] sm:$0xf]
  %v126 = vld [vmem:[%s0 + $0x1bc] sm:$0xf]
  %v127 = vld [vmem:[%s0 + $0x1c0] sm:$0xf]
  %v128 = vld [vmem:[%s0 + $0x1c4] sm:$0xf]
  %v129 = vld [vmem:[%s0 + $0x1c8] sm:$0xf]
  %v130 = vld [vmem:[%s0 + $0x1cc] sm:$0xf]
  %v131 = vld [vmem:[%s0 + $0x1d0] sm:$0xf]
  %v132 = vld [vmem:[%s0 + $0x1d4] sm:$0xf]
  %v133 = vld [vmem:[%s0 + $0x1d8] sm:$0xf]
  %v134 = vld [vmem:[%s0 + $0x1dc] sm:$0xf]
  %v135 = vld [vmem:[%s0 + $0x1e0] sm:$0xf]
  %v136 = vld [vmem:[%s0 + $0x1e4] sm:$0xf]
  %v137 = vld [vmem:[%s0 + $0x1e8] sm:$0xf]
  %v138 = vld [vmem:[%s0 + $0x1ec] sm:$0xf]
  %v139 = vld [vmem:[%s0 + $0x1f0] sm:$0xf]
  %v140 = vld [vmem:[%s0 + $0x1f4] sm:$0xf]
  %v141 = vld [vmem:[%s0 + $0x1f8] sm:$0xf]
  %v142 = vld [vmem:[%s0 + $0x1fc] sm:$0xf]
  %v143 = vld [vmem:[%s1] sm:$0x3]
  %v144 = vld [vmem:[%s2] sm:$0x1]
  %v146 = vlaneseq
  %v147 = vshrl.u32 %v146, 7
  %v148 = vsub.s32 0, %v147
  %v149 = vrot.slane %v144, %v148
  %v279 = vunpack.c.l.b16 %v15
  %v280 = vunpack.c.l.b16 %v16
  %v281 = vunpack.c.l.b16 %v17
  %v282 = vunpack.c.l.b16 %v18
  %v283 = vunpack.c.l.b16 %v19
  %v284 = vunpack.c.l.b16 %v20
  %v285 = vunpack.c.l.b16 %v21
  %v286 = vunpack.c.l.b16 %v22
  %v287 = vunpack.c.l.b16 %v23
  %v288 = vunpack.c.l.b16 %v24
  %v289 = vunpack.c.l.b16 %v25
  %v290 = vunpack.c.l.b16 %v26
  %v291 = vunpack.c.l.b16 %v27
  %v292 = vunpack.c.l.b16 %v28
  %v293 = vunpack.c.l.b16 %v29
  %v294 = vunpack.c.l.b16 %v30
  %v295 = vunpack.c.l.b16 %v31
  %v296 = vunpack.c.l.b16 %v32
  %v297 = vunpack.c.l.b16 %v33
  %v298 = vunpack.c.l.b16 %v34
  %v299 = vunpack.c.l.b16 %v35
  %v300 = vunpack.c.l.b16 %v36
  %v301 = vunpack.c.l.b16 %v37
  %v302 = vunpack.c.l.b16 %v38
  %v303 = vunpack.c.l.b16 %v39
  %v304 = vunpack.c.l.b16 %v40
  %v305 = vunpack.c.l.b16 %v41
  %v306 = vunpack.c.l.b16 %v42
  %v307 = vunpack.c.l.b16 %v43
  %v308 = vunpack.c.l.b16 %v44
  %v309 = vunpack.c.l.b16 %v45
  %v310 = vunpack.c.l.b16 %v46
  %v311 = vunpack.c.l.b16 %v47
  %v312 = vunpack.c.l.b16 %v48
  %v313 = vunpack.c.l.b16 %v49
  %v314 = vunpack.c.l.b16 %v50
  %v315 = vunpack.c.l.b16 %v51
  %v316 = vunpack.c.l.b16 %v52
  %v317 = vunpack.c.l.b16 %v53
  %v318 = vunpack.c.l.b16 %v54
  %v319 = vunpack.c.l.b16 %v55
  %v320 = vunpack.c.l.b16 %v56
  %v321 = vunpack.c.l.b16 %v57
  %v322 = vunpack.c.l.b16 %v58
  %v323 = vunpack.c.l.b16 %v59
  %v324 = vunpack.c.l.b16 %v60
  %v325 = vunpack.c.l.b16 %v61
  %v326 = vunpack.c.l.b16 %v62
  %v327 = vunpack.c.l.b16 %v63
  %v328 = vunpack.c.l.b16 %v64
  %v329 = vunpack.c.l.b16 %v65
  %v330 = vunpack.c.l.b16 %v66
  %v331 = vunpack.c.l.b16 %v67
  %v332 = vunpack.c.l.b16 %v68
  %v333 = vunpack.c.l.b16 %v69
  %v334 = vunpack.c.l.b16 %v70
  %v335 = vunpack.c.l.b16 %v71
  %v336 = vunpack.c.l.b16 %v72
  %v337 = vunpack.c.l.b16 %v73
  %v338 = vunpack.c.l.b16 %v74
  %v339 = vunpack.c.l.b16 %v75
  %v340 = vunpack.c.l.b16 %v76
  %v341 = vunpack.c.l.b16 %v77
  %v342 = vunpack.c.l.b16 %v78
  %v343 = vunpack.c.l.b16 %v79
  %v344 = vunpack.c.l.b16 %v80
  %v345 = vunpack.c.l.b16 %v81
  %v346 = vunpack.c.l.b16 %v82
  %v347 = vunpack.c.l.b16 %v83
  %v348 = vunpack.c.l.b16 %v84
  %v349 = vunpack.c.l.b16 %v85
  %v350 = vunpack.c.l.b16 %v86
  %v351 = vunpack.c.l.b16 %v87
  %v352 = vunpack.c.l.b16 %v88
  %v353 = vunpack.c.l.b16 %v89
  %v354 = vunpack.c.l.b16 %v90
  %v355 = vunpack.c.l.b16 %v91
  %v356 = vunpack.c.l.b16 %v92
  %v357 = vunpack.c.l.b16 %v93
  %v358 = vunpack.c.l.b16 %v94
  %v359 = vunpack.c.l.b16 %v95
  %v360 = vunpack.c.l.b16 %v96
  %v361 = vunpack.c.l.b16 %v97
  %v362 = vunpack.c.l.b16 %v98
  %v363 = vunpack.c.l.b16 %v99
  %v364 = vunpack.c.l.b16 %v100
  %v365 = vunpack.c.l.b16 %v101
  %v366 = vunpack.c.l.b16 %v102
  %v367 = vunpack.c.l.b16 %v103
  %v368 = vunpack.c.l.b16 %v104
  %v369 = vunpack.c.l.b16 %v105
  %v370 = vunpack.c.l.b16 %v106
  %v371 = vunpack.c.l.b16 %v107
  %v372 = vunpack.c.l.b16 %v108
  %v373 = vunpack.c.l.b16 %v109
  %v374 = vunpack.c.l.b16 %v110
  %v375 = vunpack.c.l.b16 %v111
  %v376 = vunpack.c.l.b16 %v112
  %v377 = vunpack.c.l.b16 %v113
  %v378 = vunpack.c.l.b16 %v114
  %v379 = vunpack.c.l.b16 %v115
  %v380 = vunpack.c.l.b16 %v116
  %v381 = vunpack.c.l.b16 %v117
  %v382 = vunpack.c.l.b16 %v118
  %v383 = vunpack.c.l.b16 %v119
  %v384 = vunpack.c.l.b16 %v120
  %v385 = vunpack.c.l.b16 %v121
  %v386 = vunpack.c.l.b16 %v122
  %v387 = vunpack.c.l.b16 %v123
  %v388 = vunpack.c.l.b16 %v124
  %v389 = vunpack.c.l.b16 %v125
  %v390 = vunpack.c.l.b16 %v126
  %v391 = vunpack.c.l.b16 %v127
  %v392 = vunpack.c.l.b16 %v128
  %v393 = vunpack.c.l.b16 %v129
  %v394 = vunpack.c.l.b16 %v130
  %v395 = vunpack.c.l.b16 %v131
  %v396 = vunpack.c.l.b16 %v132
  %v397 = vunpack.c.l.b16 %v133
  %v398 = vunpack.c.l.b16 %v134
  %v399 = vunpack.c.l.b16 %v135
  %v400 = vunpack.c.l.b16 %v136
  %v401 = vunpack.c.l.b16 %v137
  %v402 = vunpack.c.l.b16 %v138
  %v403 = vunpack.c.l.b16 %v139
  %v404 = vunpack.c.l.b16 %v140
  %v405 = vunpack.c.l.b16 %v141
  %v406 = vunpack.c.l.b16 %v142
  %v407 = vpack.c.b16 %v280, %v279
  %v408 = vpack.c.b16 %v282, %v281
  %v409 = vpack.c.b16 %v284, %v283
  %v410 = vpack.c.b16 %v286, %v285
  %v411 = vpack.c.b16 %v288, %v287
  %v412 = vpack.c.b16 %v290, %v289
  %v413 = vpack.c.b16 %v292, %v291
  %v414 = vpack.c.b16 %v294, %v293
  %v415 = vpack.c.b16 %v296, %v295
  %v416 = vpack.c.b16 %v298, %v297
  %v417 = vpack.c.b16 %v300, %v299
  %v418 = vpack.c.b16 %v302, %v301
  %v419 = vpack.c.b16 %v304, %v303
  %v420 = vpack.c.b16 %v306, %v305
  %v421 = vpack.c.b16 %v308, %v307
  %v422 = vpack.c.b16 %v310, %v309
  %v423 = vpack.c.b16 %v312, %v311
  %v424 = vpack.c.b16 %v314, %v313
  %v425 = vpack.c.b16 %v316, %v315
  %v426 = vpack.c.b16 %v318, %v317
  %v427 = vpack.c.b16 %v320, %v319
  %v428 = vpack.c.b16 %v322, %v321
  %v429 = vpack.c.b16 %v324, %v323
  %v430 = vpack.c.b16 %v326, %v325
  %v431 = vpack.c.b16 %v328, %v327
  %v432 = vpack.c.b16 %v330, %v329
  %v433 = vpack.c.b16 %v332, %v331
  %v434 = vpack.c.b16 %v334, %v333
  %v435 = vpack.c.b16 %v336, %v335
  %v436 = vpack.c.b16 %v338, %v337
  %v437 = vpack.c.b16 %v340, %v339
  %v438 = vpack.c.b16 %v342, %v341
  %v439 = vpack.c.b16 %v344, %v343
  %v440 = vpack.c.b16 %v346, %v345
  %v441 = vpack.c.b16 %v348, %v347
  %v442 = vpack.c.b16 %v350, %v349
  %v443 = vpack.c.b16 %v352, %v351
  %v444 = vpack.c.b16 %v354, %v353
  %v445 = vpack.c.b16 %v356, %v355
  %v446 = vpack.c.b16 %v358, %v357
  %v447 = vpack.c.b16 %v360, %v359
  %v448 = vpack.c.b16 %v362, %v361
  %v449 = vpack.c.b16 %v364, %v363
  %v450 = vpack.c.b16 %v366, %v365
  %v451 = vpack.c.b16 %v368, %v367
  %v452 = vpack.c.b16 %v370, %v369
  %v453 = vpack.c.b16 %v372, %v371
  %v454 = vpack.c.b16 %v374, %v373
  %v455 = vpack.c.b16 %v376, %v375
  %v456 = vpack.c.b16 %v378, %v377
  %v457 = vpack.c.b16 %v380, %v379
  %v458 = vpack.c.b16 %v382, %v381
  %v459 = vpack.c.b16 %v384, %v383
  %v460 = vpack.c.b16 %v386, %v385
  %v461 = vpack.c.b16 %v388, %v387
  %v462 = vpack.c.b16 %v390, %v389
  %v463 = vpack.c.b16 %v392, %v391
  %v464 = vpack.c.b16 %v394, %v393
  %v465 = vpack.c.b16 %v396, %v395
  %v466 = vpack.c.b16 %v398, %v397
  %v467 = vpack.c.b16 %v400, %v399
  %v468 = vpack.c.b16 %v402, %v401
  %v469 = vpack.c.b16 %v404, %v403
  %v470 = vpack.c.b16 %v406, %v405
  %vm471 = vcmask 31744
  %v473 = vsel %vm471, %v407, 0
  %v476 = vsel %vm471, %v408, 0
  %v479 = vsel %vm471, %v409, 0
  %v482 = vsel %vm471, %v410, 0
  %v485 = vsel %vm471, %v411, 0
  %v488 = vsel %vm471, %v412, 0
  %v491 = vsel %vm471, %v413, 0
  %v494 = vsel %vm471, %v414, 0
  %v497 = vsel %vm471, %v415, 0
  %v500 = vsel %vm471, %v416, 0
  %v503 = vsel %vm471, %v417, 0
  %v506 = vsel %vm471, %v418, 0
  %v509 = vsel %vm471, %v419, 0
  %v512 = vsel %vm471, %v420, 0
  %v515 = vsel %vm471, %v421, 0
  %v518 = vsel %vm471, %v422, 0
  %v521 = vsel %vm471, %v423, 0
  %v524 = vsel %vm471, %v424, 0
  %v527 = vsel %vm471, %v425, 0
  %v530 = vsel %vm471, %v426, 0
  %v533 = vsel %vm471, %v427, 0
  %v536 = vsel %vm471, %v428, 0
  %v539 = vsel %vm471, %v429, 0
  %v542 = vsel %vm471, %v430, 0
  %v545 = vsel %vm471, %v431, 0
  %v548 = vsel %vm471, %v432, 0
  %v551 = vsel %vm471, %v433, 0
  %v554 = vsel %vm471, %v434, 0
  %v557 = vsel %vm471, %v435, 0
  %v560 = vsel %vm471, %v436, 0
  %v563 = vsel %vm471, %v437, 0
  %v566 = vsel %vm471, %v438, 0
  %v569 = vsel %vm471, %v439, 0
  %v572 = vsel %vm471, %v440, 0
  %v575 = vsel %vm471, %v441, 0
  %v578 = vsel %vm471, %v442, 0
  %v581 = vsel %vm471, %v443, 0
  %v584 = vsel %vm471, %v444, 0
  %v587 = vsel %vm471, %v445, 0
  %v590 = vsel %vm471, %v446, 0
  %v593 = vsel %vm471, %v447, 0
  %v596 = vsel %vm471, %v448, 0
  %v599 = vsel %vm471, %v449, 0
  %v602 = vsel %vm471, %v450, 0
  %v605 = vsel %vm471, %v451, 0
  %v608 = vsel %vm471, %v452, 0
  %v611 = vsel %vm471, %v453, 0
  %v614 = vsel %vm471, %v454, 0
  %v617 = vsel %vm471, %v455, 0
  %v620 = vsel %vm471, %v456, 0
  %v623 = vsel %vm471, %v457, 0
  %v626 = vsel %vm471, %v458, 0
  %v629 = vsel %vm471, %v459, 0
  %v632 = vsel %vm471, %v460, 0
  %v635 = vsel %vm471, %v461, 0
  %v638 = vsel %vm471, %v462, 0
  %v641 = vsel %vm471, %v463, 0
  %v644 = vsel %vm471, %v464, 0
  %v647 = vsel %vm471, %v465, 0
  %v650 = vsel %vm471, %v466, 0
  %v653 = vsel %vm471, %v467, 0
  %v656 = vsel %vm471, %v468, 0
  %v659 = vsel %vm471, %v469, 0
  %v662 = vsel %vm471, %v470, 0
  %vm664 = vcmask 1041408
  %v666 = vsel %vm664, %v143, 0
  %668 = vmatprep.subr.bf16.mxu0 0
  %669 = vmatpush1.bf16.msra.mxu0 %v666
  %670 = vmatprep.subr.bf16.mxu0 0
  %671 = vmatpush1.bf16.msra.mxu0 0
  %672 = vmatprep.subr.bf16.mxu0 0
  %673 = vmatpush1.bf16.msra.mxu0 0
  %674 = vmatprep.subr.bf16.mxu0 0
  %675 = vmatpush1.bf16.msra.mxu0 0
  %676 = vmatprep.subr.bf16.mxu0 0
  %677 = vmatpush1.bf16.msra.mxu0 0
  %678 = vmatprep.subr.bf16.mxu0 0
  %679 = vmatpush1.bf16.msra.mxu0 0
  %680 = vmatprep.subr.bf16.mxu0 0
  %681 = vmatpush1.bf16.msra.mxu0 0
  %682 = vmatprep.subr.bf16.mxu0 0
  %683 = vmatpush1.bf16.msra.mxu0 0
  %684 = vmatprep.subr.bf16.mxu0 0
  %685 = vmatpush1.bf16.msra.mxu0 0
  %686 = vmatprep.subr.bf16.mxu0 0
  %687 = vmatpush1.bf16.msra.mxu0 0
  %688 = vmatprep.subr.bf16.mxu0 0
  %689 = vmatpush1.bf16.msra.mxu0 0
  %690 = vmatprep.subr.bf16.mxu0 0
  %691 = vmatpush1.bf16.msra.mxu0 0
  %692 = vmatprep.subr.bf16.mxu0 0
  %693 = vmatpush1.bf16.msra.mxu0 0
  %694 = vmatprep.subr.bf16.mxu0 0
  %695 = vmatpush1.bf16.msra.mxu0 0
  %696 = vmatprep.subr.bf16.mxu0 0
  %697 = vmatpush1.bf16.msra.mxu0 0
  %698 = vmatprep.subr.bf16.mxu0 0
  %699 = vmatpush1.bf16.msra.mxu0 0
  %700 = vmatprep.mubr.bf16.mxu0 0
  %701 = vmatmul.mubr.bf16.gmra.mrb[0].mxu0 %v473
  %v702 = vpop.f32.mrb[0].mxu0
  %v703 = vadd.f32 %v149, %v702
  %v704 = vpop.f32.mrb[0].mxu0
  %v705 = vpop.f32.mrb[0].mxu0
  %v706 = vadd.f32 %v149, %v705
  %v707 = vpop.f32.mrb[0].mxu0
  %708 = vmatprep.mubr.bf16.mxu0 0
  %709 = vmatmul.mubr.bf16.gmra.mrb[0].mxu0 %v476
  %v710 = vpop.f32.mrb[0].mxu0
  %v711 = vadd.f32 %v149, %v710
  %v712 = vpop.f32.mrb[0].mxu0
  %v713 = vpop.f32.mrb[0].mxu0
  %v714 = vadd.f32 %v149, %v713
  %v715 = vpop.f32.mrb[0].mxu0
  %716 = vmatprep.mubr.bf16.mxu0 0
  %717 = vmatmul.mubr.bf16.gmra.mrb[0].mxu0 %v479
  %v718 = vpop.f32.mrb[0].mxu0
  %v719 = vadd.f32 %v149, %v718
  %v720 = vpop.f32.mrb[0].mxu0
  %v721 = vpop.f32.mrb[0].mxu0
  %v722 = vadd.f32 %v149, %v721
  %v723 = vpop.f32.mrb[0].mxu0
  %724 = vmatprep.mubr.bf16.mxu0 0
  %725 = vmatmul.mubr.bf16.gmra.mrb[0].mxu0 %v482
  %v726 = vpop.f32.mrb[0].mxu0
  %v727 = vadd.f32 %v149, %v726
  %v728 = vpop.f32.mrb[0].mxu0
  %v729 = vpop.f32.mrb[0].mxu0
  %v730 = vadd.f32 %v149, %v729
  %v731 = vpop.f32.mrb[0].mxu0
  %732 = vmatprep.mubr.bf16.mxu0 0
  %733 = vmatmul.mubr.bf16.gmra.mrb[0].mxu0 %v485
  %v734 = vpop.f32.mrb[0].mxu0
  %v735 = vadd.f32 %v149, %v734
  %v736 = vpop.f32.mrb[0].mxu0
  %v737 = vpop.f32.mrb[0].mxu0
  %v738 = vadd.f32 %v149, %v737
  %v739 = vpop.f32.mrb[0].mxu0
  %740 = vmatprep.mubr.bf16.mxu0 0
  %741 = vmatmul.mubr.bf16.gmra.mrb[0].mxu0 %v488
  %v742 = vpop.f32.mrb[0].mxu0
  %v743 = vadd.f32 %v149, %v742
  %v744 = vpop.f32.mrb[0].mxu0
  %v745 = vpop.f32.mrb[0].mxu0
  %v746 = vadd.f32 %v149, %v745
  %v747 = vpop.f32.mrb[0].mxu0
  %748 = vmatprep.mubr.bf16.mxu0 0
  %749 = vmatmul.mubr.bf16.gmra.mrb[0].mxu0 %v491
  %v750 = vpop.f32.mrb[0].mxu0
  %v751 = vadd.f32 %v149, %v750
  %v752 = vpop.f32.mrb[0].mxu0
  %v753 = vpop.f32.mrb[0].mxu0
  %v754 = vadd.f32 %v149, %v753
  %v755 = vpop.f32.mrb[0].mxu0
  %756 = vmatprep.mubr.bf16.mxu0 0
  %757 = vmatmul.mubr.bf16.gmra.mrb[0].mxu0 %v494
  %v758 = vpop.f32.mrb[0].mxu0
  %v759 = vadd.f32 %v149, %v758
  %v760 = vpop.f32.mrb[0].mxu0
  %v761 = vpop.f32.mrb[0].mxu0
  %v762 = vadd.f32 %v149, %v761
  %v763 = vpop.f32.mrb[0].mxu0
  %764 = vmatprep.mubr.bf16.mxu0 0
  %765 = vmatmul.mubr.bf16.gmra.mrb[0].mxu0 %v497
  %v766 = vpop.f32.mrb[0].mxu0
  %v767 = vadd.f32 %v149, %v766
  %v768 = vpop.f32.mrb[0].mxu0
  %v769 = vpop.f32.mrb[0].mxu0
  %v770 = vadd.f32 %v149, %v769
  %v771 = vpop.f32.mrb[0].mxu0
  %772 = vmatprep.mubr.bf16.mxu0 0
  %773 = vmatmul.mubr.bf16.gmra.mrb[0].mxu0 %v500
  %v774 = vpop.f32.mrb[0].mxu0
  %v775 = vadd.f32 %v149, %v774
  %v776 = vpop.f32.mrb[0].mxu0
  %v777 = vpop.f32.mrb[0].mxu0
  %v778 = vadd.f32 %v149, %v777
  %v779 = vpop.f32.mrb[0].mxu0
  %780 = vmatprep.mubr.bf16.mxu0 0
  %781 = vmatmul.mubr.bf16.gmra.mrb[0].mxu0 %v503
  %v782 = vpop.f32.mrb[0].mxu0
  %v783 = vadd.f32 %v149, %v782
  %v784 = vpop.f32.mrb[0].mxu0
  %v785 = vpop.f32.mrb[0].mxu0
  %v786 = vadd.f32 %v149, %v785
  %v787 = vpop.f32.mrb[0].mxu0
  %788 = vmatprep.mubr.bf16.mxu0 0
  %789 = vmatmul.mubr.bf16.gmra.mrb[0].mxu0 %v506
  %v790 = vpop.f32.mrb[0].mxu0
  %v791 = vadd.f32 %v149, %v790
  %v792 = vpop.f32.mrb[0].mxu0
  %v793 = vpop.f32.mrb[0].mxu0
  %v794 = vadd.f32 %v149, %v793
  %v795 = vpop.f32.mrb[0].mxu0
  %796 = vmatprep.mubr.bf16.mxu0 0
  %797 = vmatmul.mubr.bf16.gmra.mrb[0].mxu0 %v509
  %v798 = vpop.f32.mrb[0].mxu0
  %v799 = vadd.f32 %v149, %v798
  %v800 = vpop.f32.mrb[0].mxu0
  %v801 = vpop.f32.mrb[0].mxu0
  %v802 = vadd.f32 %v149, %v801
  %v803 = vpop.f32.mrb[0].mxu0
  %804 = vmatprep.mubr.bf16.mxu0 0
  %805 = vmatmul.mubr.bf16.gmra.mrb[0].mxu0 %v512
  %v806 = vpop.f32.mrb[0].mxu0
  %v807 = vadd.f32 %v149, %v806
  %v808 = vpop.f32.mrb[0].mxu0
  %v809 = vpop.f32.mrb[0].mxu0
  %v810 = vadd.f32 %v149, %v809
  %v811 = vpop.f32.mrb[0].mxu0
  %812 = vmatprep.mubr.bf16.mxu0 0
  %813 = vmatmul.mubr.bf16.gmra.mrb[0].mxu0 %v515
  %v814 = vpop.f32.mrb[0].mxu0
  %v815 = vadd.f32 %v149, %v814
  %v816 = vpop.f32.mrb[0].mxu0
  %v817 = vpop.f32.mrb[0].mxu0
  %v818 = vadd.f32 %v149, %v817
  %v819 = vpop.f32.mrb[0].mxu0
  %820 = vmatprep.mubr.bf16.mxu0 0
  %821 = vmatmul.mubr.bf16.gmra.mrb[0].mxu0 %v518
  %v822 = vpop.f32.mrb[0].mxu0
  %v823 = vadd.f32 %v149, %v822
  %v824 = vpop.f32.mrb[0].mxu0
  %v825 = vpop.f32.mrb[0].mxu0
  %v826 = vadd.f32 %v149, %v825
  %v827 = vpop.f32.mrb[0].mxu0
  %828 = vmatprep.mubr.bf16.mxu0 0
  %829 = vmatmul.mubr.bf16.gmra.mrb[0].mxu0 %v521
  %v830 = vpop.f32.mrb[0].mxu0
  %v831 = vadd.f32 %v149, %v830
  %v832 = vpop.f32.mrb[0].mxu0
  %v833 = vpop.f32.mrb[0].mxu0
  %v834 = vadd.f32 %v149, %v833
  %v835 = vpop.f32.mrb[0].mxu0
  %836 = vmatprep.mubr.bf16.mxu0 0
  %837 = vmatmul.mubr.bf16.gmra.mrb[0].mxu0 %v524
  %v838 = vpop.f32.mrb[0].mxu0
  %v839 = vadd.f32 %v149, %v838
  %v840 = vpop.f32.mrb[0].mxu0
  %v841 = vpop.f32.mrb[0].mxu0
  %v842 = vadd.f32 %v149, %v841
  %v843 = vpop.f32.mrb[0].mxu0
  %844 = vmatprep.mubr.bf16.mxu0 0
  %845 = vmatmul.mubr.bf16.gmra.mrb[0].mxu0 %v527
  %v846 = vpop.f32.mrb[0].mxu0
  %v847 = vadd.f32 %v149, %v846
  %v848 = vpop.f32.mrb[0].mxu0
  %v849 = vpop.f32.mrb[0].mxu0
  %v850 = vadd.f32 %v149, %v849
  %v851 = vpop.f32.mrb[0].mxu0
  %852 = vmatprep.mubr.bf16.mxu0 0
  %853 = vmatmul.mubr.bf16.gmra.mrb[0].mxu0 %v530
  %v854 = vpop.f32.mrb[0].mxu0
  %v855 = vadd.f32 %v149, %v854
  %v856 = vpop.f32.mrb[0].mxu0
  %v857 = vpop.f32.mrb[0].mxu0
  %v858 = vadd.f32 %v149, %v857
  %v859 = vpop.f32.mrb[0].mxu0
  %860 = vmatprep.mubr.bf16.mxu0 0
  %861 = vmatmul.mubr.bf16.gmra.mrb[0].mxu0 %v533
  %v862 = vpop.f32.mrb[0].mxu0
  %v863 = vadd.f32 %v149, %v862
  %v864 = vpop.f32.mrb[0].mxu0
  %v865 = vpop.f32.mrb[0].mxu0
  %v866 = vadd.f32 %v149, %v865
  %v867 = vpop.f32.mrb[0].mxu0
  %868 = vmatprep.mubr.bf16.mxu0 0
  %869 = vmatmul.mubr.bf16.gmra.mrb[0].mxu0 %v536
  %v870 = vpop.f32.mrb[0].mxu0
  %v871 = vadd.f32 %v149, %v870
  %v872 = vpop.f32.mrb[0].mxu0
  %v873 = vpop.f32.mrb[0].mxu0
  %v874 = vadd.f32 %v149, %v873
  %v875 = vpop.f32.mrb[0].mxu0
  %876 = vmatprep.mubr.bf16.mxu0 0
  %877 = vmatmul.mubr.bf16.gmra.mrb[0].mxu0 %v539
  %v878 = vpop.f32.mrb[0].mxu0
  %v879 = vadd.f32 %v149, %v878
  %v880 = vpop.f32.mrb[0].mxu0
  %v881 = vpop.f32.mrb[0].mxu0
  %v882 = vadd.f32 %v149, %v881
  %v883 = vpop.f32.mrb[0].mxu0
  %884 = vmatprep.mubr.bf16.mxu0 0
  %885 = vmatmul.mubr.bf16.gmra.mrb[0].mxu0 %v542
  %v886 = vpop.f32.mrb[0].mxu0
  %v887 = vadd.f32 %v149, %v886
  %v888 = vpop.f32.mrb[0].mxu0
  %v889 = vpop.f32.mrb[0].mxu0
  %v890 = vadd.f32 %v149, %v889
  %v891 = vpop.f32.mrb[0].mxu0
  %892 = vmatprep.mubr.bf16.mxu0 0
  %893 = vmatmul.mubr.bf16.gmra.mrb[0].mxu0 %v545
  %v894 = vpop.f32.mrb[0].mxu0
  %v895 = vadd.f32 %v149, %v894
  %v896 = vpop.f32.mrb[0].mxu0
  %v897 = vpop.f32.mrb[0].mxu0
  %v898 = vadd.f32 %v149, %v897
  %v899 = vpop.f32.mrb[0].mxu0
  %900 = vmatprep.mubr.bf16.mxu0 0
  %901 = vmatmul.mubr.bf16.gmra.mrb[0].mxu0 %v548
  %v902 = vpop.f32.mrb[0].mxu0
  %v903 = vadd.f32 %v149, %v902
  %v904 = vpop.f32.mrb[0].mxu0
  %v905 = vpop.f32.mrb[0].mxu0
  %v906 = vadd.f32 %v149, %v905
  %v907 = vpop.f32.mrb[0].mxu0
  %908 = vmatprep.mubr.bf16.mxu0 0
  %909 = vmatmul.mubr.bf16.gmra.mrb[0].mxu0 %v551
  %v910 = vpop.f32.mrb[0].mxu0
  %v911 = vadd.f32 %v149, %v910
  %v912 = vpop.f32.mrb[0].mxu0
  %v913 = vpop.f32.mrb[0].mxu0
  %v914 = vadd.f32 %v149, %v913
  %v915 = vpop.f32.mrb[0].mxu0
  %916 = vmatprep.mubr.bf16.mxu0 0
  %917 = vmatmul.mubr.bf16.gmra.mrb[0].mxu0 %v554
  %v918 = vpop.f32.mrb[0].mxu0
  %v919 = vadd.f32 %v149, %v918
  %v920 = vpop.f32.mrb[0].mxu0
  %v921 = vpop.f32.mrb[0].mxu0
  %v922 = vadd.f32 %v149, %v921
  %v923 = vpop.f32.mrb[0].mxu0
  %924 = vmatprep.mubr.bf16.mxu0 0
  %925 = vmatmul.mubr.bf16.gmra.mrb[0].mxu0 %v557
  %v926 = vpop.f32.mrb[0].mxu0
  %v927 = vadd.f32 %v149, %v926
  %v928 = vpop.f32.mrb[0].mxu0
  %v929 = vpop.f32.mrb[0].mxu0
  %v930 = vadd.f32 %v149, %v929
  %v931 = vpop.f32.mrb[0].mxu0
  %932 = vmatprep.mubr.bf16.mxu0 0
  %933 = vmatmul.mubr.bf16.gmra.mrb[0].mxu0 %v560
  %v934 = vpop.f32.mrb[0].mxu0
  %v935 = vadd.f32 %v149, %v934
  %v936 = vpop.f32.mrb[0].mxu0
  %v937 = vpop.f32.mrb[0].mxu0
  %v938 = vadd.f32 %v149, %v937
  %v939 = vpop.f32.mrb[0].mxu0
  %940 = vmatprep.mubr.bf16.mxu0 0
  %941 = vmatmul.mubr.bf16.gmra.mrb[0].mxu0 %v563
  %v942 = vpop.f32.mrb[0].mxu0
  %v943 = vadd.f32 %v149, %v942
  %v944 = vpop.f32.mrb[0].mxu0
  %v945 = vpop.f32.mrb[0].mxu0
  %v946 = vadd.f32 %v149, %v945
  %v947 = vpop.f32.mrb[0].mxu0
  %948 = vmatprep.mubr.bf16.mxu0 0
  %949 = vmatmul.mubr.bf16.gmra.mrb[0].mxu0 %v566
  %v950 = vpop.f32.mrb[0].mxu0
  %v951 = vadd.f32 %v149, %v950
  %v952 = vpop.f32.mrb[0].mxu0
  %v953 = vpop.f32.mrb[0].mxu0
  %v954 = vadd.f32 %v149, %v953
  %v955 = vpop.f32.mrb[0].mxu0
  %956 = vmatprep.mubr.bf16.mxu0 0
  %957 = vmatmul.mubr.bf16.gmra.mrb[0].mxu0 %v569
  %v958 = vpop.f32.mrb[0].mxu0
  %v959 = vadd.f32 %v149, %v958
  %v960 = vpop.f32.mrb[0].mxu0
  %v961 = vpop.f32.mrb[0].mxu0
  %v962 = vadd.f32 %v149, %v961
  %v963 = vpop.f32.mrb[0].mxu0
  %964 = vmatprep.mubr.bf16.mxu0 0
  %965 = vmatmul.mubr.bf16.gmra.mrb[0].mxu0 %v572
  %v966 = vpop.f32.mrb[0].mxu0
  %v967 = vadd.f32 %v149, %v966
  %v968 = vpop.f32.mrb[0].mxu0
  %v969 = vpop.f32.mrb[0].mxu0
  %v970 = vadd.f32 %v149, %v969
  %v971 = vpop.f32.mrb[0].mxu0
  %972 = vmatprep.mubr.bf16.mxu0 0
  %973 = vmatmul.mubr.bf16.gmra.mrb[0].mxu0 %v575
  %v974 = vpop.f32.mrb[0].mxu0
  %v975 = vadd.f32 %v149, %v974
  %v976 = vpop.f32.mrb[0].mxu0
  %v977 = vpop.f32.mrb[0].mxu0
  %v978 = vadd.f32 %v149, %v977
  %v979 = vpop.f32.mrb[0].mxu0
  %980 = vmatprep.mubr.bf16.mxu0 0
  %981 = vmatmul.mubr.bf16.gmra.mrb[0].mxu0 %v578
  %v982 = vpop.f32.mrb[0].mxu0
  %v983 = vadd.f32 %v149, %v982
  %v984 = vpop.f32.mrb[0].mxu0
  %v985 = vpop.f32.mrb[0].mxu0
  %v986 = vadd.f32 %v149, %v985
  %v987 = vpop.f32.mrb[0].mxu0
  %988 = vmatprep.mubr.bf16.mxu0 0
  %989 = vmatmul.mubr.bf16.gmra.mrb[0].mxu0 %v581
  %v990 = vpop.f32.mrb[0].mxu0
  %v991 = vadd.f32 %v149, %v990
  %v992 = vpop.f32.mrb[0].mxu0
  %v993 = vpop.f32.mrb[0].mxu0
  %v994 = vadd.f32 %v149, %v993
  %v995 = vpop.f32.mrb[0].mxu0
  %996 = vmatprep.mubr.bf16.mxu0 0
  %997 = vmatmul.mubr.bf16.gmra.mrb[0].mxu0 %v584
  %v998 = vpop.f32.mrb[0].mxu0
  %v999 = vadd.f32 %v149, %v998
  %v1000 = vpop.f32.mrb[0].mxu0
  %v1001 = vpop.f32.mrb[0].mxu0
  %v1002 = vadd.f32 %v149, %v1001
  %v1003 = vpop.f32.mrb[0].mxu0
  %1004 = vmatprep.mubr.bf16.mxu0 0
  %1005 = vmatmul.mubr.bf16.gmra.mrb[0].mxu0 %v587
  %v1006 = vpop.f32.mrb[0].mxu0
  %v1007 = vadd.f32 %v149, %v1006
  %v1008 = vpop.f32.mrb[0].mxu0
  %v1009 = vpop.f32.mrb[0].mxu0
  %v1010 = vadd.f32 %v149, %v1009
  %v1011 = vpop.f32.mrb[0].mxu0
  %1012 = vmatprep.mubr.bf16.mxu0 0
  %1013 = vmatmul.mubr.bf16.gmra.mrb[0].mxu0 %v590
  %v1014 = vpop.f32.mrb[0].mxu0
  %v1015 = vadd.f32 %v149, %v1014
  %v1016 = vpop.f32.mrb[0].mxu0
  %v1017 = vpop.f32.mrb[0].mxu0
  %v1018 = vadd.f32 %v149, %v1017
  %v1019 = vpop.f32.mrb[0].mxu0
  %1020 = vmatprep.mubr.bf16.mxu0 0
  %1021 = vmatmul.mubr.bf16.gmra.mrb[0].mxu0 %v593
  %v1022 = vpop.f32.mrb[0].mxu0
  %v1023 = vadd.f32 %v149, %v1022
  %v1024 = vpop.f32.mrb[0].mxu0
  %v1025 = vpop.f32.mrb[0].mxu0
  %v1026 = vadd.f32 %v149, %v1025
  %v1027 = vpop.f32.mrb[0].mxu0
  %1028 = vmatprep.mubr.bf16.mxu0 0
  %1029 = vmatmul.mubr.bf16.gmra.mrb[0].mxu0 %v596
  %v1030 = vpop.f32.mrb[0].mxu0
  %v1031 = vadd.f32 %v149, %v1030
  %v1032 = vpop.f32.mrb[0].mxu0
  %v1033 = vpop.f32.mrb[0].mxu0
  %v1034 = vadd.f32 %v149, %v1033
  %v1035 = vpop.f32.mrb[0].mxu0
  %1036 = vmatprep.mubr.bf16.mxu0 0
  %1037 = vmatmul.mubr.bf16.gmra.mrb[0].mxu0 %v599
  %v1038 = vpop.f32.mrb[0].mxu0
  %v1039 = vadd.f32 %v149, %v1038
  %v1040 = vpop.f32.mrb[0].mxu0
  %v1041 = vpop.f32.mrb[0].mxu0
  %v1042 = vadd.f32 %v149, %v1041
  %v1043 = vpop.f32.mrb[0].mxu0
  %1044 = vmatprep.mubr.bf16.mxu0 0
  %1045 = vmatmul.mubr.bf16.gmra.mrb[0].mxu0 %v602
  %v1046 = vpop.f32.mrb[0].mxu0
  %v1047 = vadd.f32 %v149, %v1046
  %v1048 = vpop.f32.mrb[0].mxu0
  %v1049 = vpop.f32.mrb[0].mxu0
  %v1050 = vadd.f32 %v149, %v1049
  %v1051 = vpop.f32.mrb[0].mxu0
  %1052 = vmatprep.mubr.bf16.mxu0 0
  %1053 = vmatmul.mubr.bf16.gmra.mrb[0].mxu0 %v605
  %v1054 = vpop.f32.mrb[0].mxu0
  %v1055 = vadd.f32 %v149, %v1054
  %v1056 = vpop.f32.mrb[0].mxu0
  %v1057 = vpop.f32.mrb[0].mxu0
  %v1058 = vadd.f32 %v149, %v1057
  %v1059 = vpop.f32.mrb[0].mxu0
  %1060 = vmatprep.mubr.bf16.mxu0 0
  %1061 = vmatmul.mubr.bf16.gmra.mrb[0].mxu0 %v608
  %v1062 = vpop.f32.mrb[0].mxu0
  %v1063 = vadd.f32 %v149, %v1062
  %v1064 = vpop.f32.mrb[0].mxu0
  %v1065 = vpop.f32.mrb[0].mxu0
  %v1066 = vadd.f32 %v149, %v1065
  %v1067 = vpop.f32.mrb[0].mxu0
  %1068 = vmatprep.mubr.bf16.mxu0 0
  %1069 = vmatmul.mubr.bf16.gmra.mrb[0].mxu0 %v611
  %v1070 = vpop.f32.mrb[0].mxu0
  %v1071 = vadd.f32 %v149, %v1070
  %v1072 = vpop.f32.mrb[0].mxu0
  %v1073 = vpop.f32.mrb[0].mxu0
  %v1074 = vadd.f32 %v149, %v1073
  %v1075 = vpop.f32.mrb[0].mxu0
  %1076 = vmatprep.mubr.bf16.mxu0 0
  %1077 = vmatmul.mubr.bf16.gmra.mrb[0].mxu0 %v614
  %v1078 = vpop.f32.mrb[0].mxu0
  %v1079 = vadd.f32 %v149, %v1078
  %v1080 = vpop.f32.mrb[0].mxu0
  %v1081 = vpop.f32.mrb[0].mxu0
  %v1082 = vadd.f32 %v149, %v1081
  %v1083 = vpop.f32.mrb[0].mxu0
  %1084 = vmatprep.mubr.bf16.mxu0 0
  %1085 = vmatmul.mubr.bf16.gmra.mrb[0].mxu0 %v617
  %v1086 = vpop.f32.mrb[0].mxu0
  %v1087 = vadd.f32 %v149, %v1086
  %v1088 = vpop.f32.mrb[0].mxu0
  %v1089 = vpop.f32.mrb[0].mxu0
  %v1090 = vadd.f32 %v149, %v1089
  %v1091 = vpop.f32.mrb[0].mxu0
  %1092 = vmatprep.mubr.bf16.mxu0 0
  %1093 = vmatmul.mubr.bf16.gmra.mrb[0].mxu0 %v620
  %v1094 = vpop.f32.mrb[0].mxu0
  %v1095 = vadd.f32 %v149, %v1094
  %v1096 = vpop.f32.mrb[0].mxu0
  %v1097 = vpop.f32.mrb[0].mxu0
  %v1098 = vadd.f32 %v149, %v1097
  %v1099 = vpop.f32.mrb[0].mxu0
  %1100 = vmatprep.mubr.bf16.mxu0 0
  %1101 = vmatmul.mubr.bf16.gmra.mrb[0].mxu0 %v623
  %v1102 = vpop.f32.mrb[0].mxu0
  %v1103 = vadd.f32 %v149, %v1102
  %v1104 = vpop.f32.mrb[0].mxu0
  %v1105 = vpop.f32.mrb[0].mxu0
  %v1106 = vadd.f32 %v149, %v1105
  %v1107 = vpop.f32.mrb[0].mxu0
  %1108 = vmatprep.mubr.bf16.mxu0 0
  %1109 = vmatmul.mubr.bf16.gmra.mrb[0].mxu0 %v626
  %v1110 = vpop.f32.mrb[0].mxu0
  %v1111 = vadd.f32 %v149, %v1110
  %v1112 = vpop.f32.mrb[0].mxu0
  %v1113 = vpop.f32.mrb[0].mxu0
  %v1114 = vadd.f32 %v149, %v1113
  %v1115 = vpop.f32.mrb[0].mxu0
  %1116 = vmatprep.mubr.bf16.mxu0 0
  %1117 = vmatmul.mubr.bf16.gmra.mrb[0].mxu0 %v629
  %v1118 = vpop.f32.mrb[0].mxu0
  %v1119 = vadd.f32 %v149, %v1118
  %v1120 = vpop.f32.mrb[0].mxu0
  %v1121 = vpop.f32.mrb[0].mxu0
  %v1122 = vadd.f32 %v149, %v1121
  %v1123 = vpop.f32.mrb[0].mxu0
  %1124 = vmatprep.mubr.bf16.mxu0 0
  %1125 = vmatmul.mubr.bf16.gmra.mrb[0].mxu0 %v632
  %v1126 = vpop.f32.mrb[0].mxu0
  %v1127 = vadd.f32 %v149, %v1126
  %v1128 = vpop.f32.mrb[0].mxu0
  %v1129 = vpop.f32.mrb[0].mxu0
  %v1130 = vadd.f32 %v149, %v1129
  %v1131 = vpop.f32.mrb[0].mxu0
  %1132 = vmatprep.mubr.bf16.mxu0 0
  %1133 = vmatmul.mubr.bf16.gmra.mrb[0].mxu0 %v635
  %v1134 = vpop.f32.mrb[0].mxu0
  %v1135 = vadd.f32 %v149, %v1134
  %v1136 = vpop.f32.mrb[0].mxu0
  %v1137 = vpop.f32.mrb[0].mxu0
  %v1138 = vadd.f32 %v149, %v1137
  %v1139 = vpop.f32.mrb[0].mxu0
  %1140 = vmatprep.mubr.bf16.mxu0 0
  %1141 = vmatmul.mubr.bf16.gmra.mrb[0].mxu0 %v638
  %v1142 = vpop.f32.mrb[0].mxu0
  %v1143 = vadd.f32 %v149, %v1142
  %v1144 = vpop.f32.mrb[0].mxu0
  %v1145 = vpop.f32.mrb[0].mxu0
  %v1146 = vadd.f32 %v149, %v1145
  %v1147 = vpop.f32.mrb[0].mxu0
  %1148 = vmatprep.mubr.bf16.mxu0 0
  %1149 = vmatmul.mubr.bf16.gmra.mrb[0].mxu0 %v641
  %v1150 = vpop.f32.mrb[0].mxu0
  %v1151 = vadd.f32 %v149, %v1150
  %v1152 = vpop.f32.mrb[0].mxu0
  %v1153 = vpop.f32.mrb[0].mxu0
  %v1154 = vadd.f32 %v149, %v1153
  %v1155 = vpop.f32.mrb[0].mxu0
  %1156 = vmatprep.mubr.bf16.mxu0 0
  %1157 = vmatmul.mubr.bf16.gmra.mrb[0].mxu0 %v644
  %v1158 = vpop.f32.mrb[0].mxu0
  %v1159 = vadd.f32 %v149, %v1158
  %v1160 = vpop.f32.mrb[0].mxu0
  %v1161 = vpop.f32.mrb[0].mxu0
  %v1162 = vadd.f32 %v149, %v1161
  %v1163 = vpop.f32.mrb[0].mxu0
  %1164 = vmatprep.mubr.bf16.mxu0 0
  %1165 = vmatmul.mubr.bf16.gmra.mrb[0].mxu0 %v647
  %v1166 = vpop.f32.mrb[0].mxu0
  %v1167 = vadd.f32 %v149, %v1166
  %v1168 = vpop.f32.mrb[0].mxu0
  %v1169 = vpop.f32.mrb[0].mxu0
  %v1170 = vadd.f32 %v149, %v1169
  %v1171 = vpop.f32.mrb[0].mxu0
  %1172 = vmatprep.mubr.bf16.mxu0 0
  %1173 = vmatmul.mubr.bf16.gmra.mrb[0].mxu0 %v650
  %v1174 = vpop.f32.mrb[0].mxu0
  %v1175 = vadd.f32 %v149, %v1174
  %v1176 = vpop.f32.mrb[0].mxu0
  %v1177 = vpop.f32.mrb[0].mxu0
  %v1178 = vadd.f32 %v149, %v1177
  %v1179 = vpop.f32.mrb[0].mxu0
  %1180 = vmatprep.mubr.bf16.mxu0 0
  %1181 = vmatmul.mubr.bf16.gmra.mrb[0].mxu0 %v653
  %v1182 = vpop.f32.mrb[0].mxu0
  %v1183 = vadd.f32 %v149, %v1182
  %v1184 = vpop.f32.mrb[0].mxu0
  %v1185 = vpop.f32.mrb[0].mxu0
  %v1186 = vadd.f32 %v149, %v1185
  %v1187 = vpop.f32.mrb[0].mxu0
  %1188 = vmatprep.mubr.bf16.mxu0 0
  %1189 = vmatmul.mubr.bf16.gmra.mrb[0].mxu0 %v656
  %v1190 = vpop.f32.mrb[0].mxu0
  %v1191 = vadd.f32 %v149, %v1190
  %v1192 = vpop.f32.mrb[0].mxu0
  %v1193 = vpop.f32.mrb[0].mxu0
  %v1194 = vadd.f32 %v149, %v1193
  %v1195 = vpop.f32.mrb[0].mxu0
  %1196 = vmatprep.mubr.bf16.mxu0 0
  %1197 = vmatmul.mubr.bf16.gmra.mrb[0].mxu0 %v659
  %v1198 = vpop.f32.mrb[0].mxu0
  %v1199 = vadd.f32 %v149, %v1198
  %v1200 = vpop.f32.mrb[0].mxu0
  %v1201 = vpop.f32.mrb[0].mxu0
  %v1202 = vadd.f32 %v149, %v1201
  %v1203 = vpop.f32.mrb[0].mxu0
  %1204 = vmatprep.mubr.bf16.mxu0 0
  %1205 = vmatmul.mubr.bf16.gmra.mrb[0].mxu0 %v662
  %v1206 = vpop.f32.mrb[0].mxu0
  %v1207 = vadd.f32 %v149, %v1206
  %v1208 = vpop.f32.mrb[0].mxu0
  %v1209 = vpop.f32.mrb[0].mxu0
  %v1210 = vadd.f32 %v149, %v1209
  %v1211 = vpop.f32.mrb[0].mxu0
  %1212 = vdwg.mxu0
  %1213 = vst [vmem:[%s3] sm:$0xff] %v703
  %1214 = vst [vmem:[%s3 + $0x8] sm:$0xff] %v706
  %1215 = vst [vmem:[%s3 + $0x10] sm:$0xff] %v711
  %1216 = vst [vmem:[%s3 + $0x18] sm:$0xff] %v714
  %1217 = vst [vmem:[%s3 + $0x20] sm:$0xff] %v719
  %1218 = vst [vmem:[%s3 + $0x28] sm:$0xff] %v722
  %1219 = vst [vmem:[%s3 + $0x30] sm:$0xff] %v727
  %1220 = vst [vmem:[%s3 + $0x38] sm:$0xff] %v730
  %1221 = vst [vmem:[%s3 + $0x40] sm:$0xff] %v735
  %1222 = vst [vmem:[%s3 + $0x48] sm:$0xff] %v738
  %1223 = vst [vmem:[%s3 + $0x50] sm:$0xff] %v743
  %1224 = vst [vmem:[%s3 + $0x58] sm:$0xff] %v746
  %1225 = vst [vmem:[%s3 + $0x60] sm:$0xff] %v751
  %1226 = vst [vmem:[%s3 + $0x68] sm:$0xff] %v754
  %1227 = vst [vmem:[%s3 + $0x70] sm:$0xff] %v759
  %1228 = vst [vmem:[%s3 + $0x78] sm:$0xff] %v762
  %1229 = vst [vmem:[%s3 + $0x80] sm:$0xff] %v767
  %1230 = vst [vmem:[%s3 + $0x88] sm:$0xff] %v770
  %1231 = vst [vmem:[%s3 + $0x90] sm:$0xff] %v775
  %1232 = vst [vmem:[%s3 + $0x98] sm:$0xff] %v778
  %1233 = vst [vmem:[%s3 + $0xa0] sm:$0xff] %v783
  %1234 = vst [vmem:[%s3 + $0xa8] sm:$0xff] %v786
  %1235 = vst [vmem:[%s3 + $0xb0] sm:$0xff] %v791
  %1236 = vst [vmem:[%s3 + $0xb8] sm:$0xff] %v794
  %1237 = vst [vmem:[%s3 + $0xc0] sm:$0xff] %v799
  %1238 = vst [vmem:[%s3 + $0xc8] sm:$0xff] %v802
  %1239 = vst [vmem:[%s3 + $0xd0] sm:$0xff] %v807
  %1240 = vst [vmem:[%s3 + $0xd8] sm:$0xff] %v810
  %1241 = vst [vmem:[%s3 + $0xe0] sm:$0xff] %v815
  %1242 = vst [vmem:[%s3 + $0xe8] sm:$0xff] %v818
  %1243 = vst [vmem:[%s3 + $0xf0] sm:$0xff] %v823
  %1244 = vst [vmem:[%s3 + $0xf8] sm:$0xff] %v826
  %1245 = vst [vmem:[%s3 + $0x100] sm:$0xff] %v831
  %1246 = vst [vmem:[%s3 + $0x108] sm:$0xff] %v834
  %1247 = vst [vmem:[%s3 + $0x110] sm:$0xff] %v839
  %1248 = vst [vmem:[%s3 + $0x118] sm:$0xff] %v842
  %1249 = vst [vmem:[%s3 + $0x120] sm:$0xff] %v847
  %1250 = vst [vmem:[%s3 + $0x128] sm:$0xff] %v850
  %1251 = vst [vmem:[%s3 + $0x130] sm:$0xff] %v855
  %1252 = vst [vmem:[%s3 + $0x138] sm:$0xff] %v858
  %1253 = vst [vmem:[%s3 + $0x140] sm:$0xff] %v863
  %1254 = vst [vmem:[%s3 + $0x148] sm:$0xff] %v866
  %1255 = vst [vmem:[%s3 + $0x150] sm:$0xff] %v871
  %1256 = vst [vmem:[%s3 + $0x158] sm:$0xff] %v874
  %1257 = vst [vmem:[%s3 + $0x160] sm:$0xff] %v879
  %1258 = vst [vmem:[%s3 + $0x168] sm:$0xff] %v882
  %1259 = vst [vmem:[%s3 + $0x170] sm:$0xff] %v887
  %1260 = vst [vmem:[%s3 + $0x178] sm:$0xff] %v890
  %1261 = vst [vmem:[%s3 + $0x180] sm:$0xff] %v895
  %1262 = vst [vmem:[%s3 + $0x188] sm:$0xff] %v898
  %1263 = vst [vmem:[%s3 + $0x190] sm:$0xff] %v903
  %1264 = vst [vmem:[%s3 + $0x198] sm:$0xff] %v906
  %1265 = vst [vmem:[%s3 + $0x1a0] sm:$0xff] %v911
  %1266 = vst [vmem:[%s3 + $0x1a8] sm:$0xff] %v914
  %1267 = vst [vmem:[%s3 + $0x1b0] sm:$0xff] %v919
  %1268 = vst [vmem:[%s3 + $0x1b8] sm:$0xff] %v922
  %1269 = vst [vmem:[%s3 + $0x1c0] sm:$0xff] %v927
  %1270 = vst [vmem:[%s3 + $0x1c8] sm:$0xff] %v930
  %1271 = vst [vmem:[%s3 + $0x1d0] sm:$0xff] %v935
  %1272 = vst [vmem:[%s3 + $0x1d8] sm:$0xff] %v938
  %1273 = vst [vmem:[%s3 + $0x1e0] sm:$0xff] %v943
  %1274 = vst [vmem:[%s3 + $0x1e8] sm:$0xff] %v946
  %1275 = vst [vmem:[%s3 + $0x1f0] sm:$0xff] %v951
  %1276 = vst [vmem:[%s3 + $0x1f8] sm:$0xff] %v954
  %1277 = vst [vmem:[%s3 + $0x200] sm:$0xff] %v959
  %1278 = vst [vmem:[%s3 + $0x208] sm:$0xff] %v962
  %1279 = vst [vmem:[%s3 + $0x210] sm:$0xff] %v967
  %1280 = vst [vmem:[%s3 + $0x218] sm:$0xff] %v970
  %1281 = vst [vmem:[%s3 + $0x220] sm:$0xff] %v975
  %1282 = vst [vmem:[%s3 + $0x228] sm:$0xff] %v978
  %1283 = vst [vmem:[%s3 + $0x230] sm:$0xff] %v983
  %1284 = vst [vmem:[%s3 + $0x238] sm:$0xff] %v986
  %1285 = vst [vmem:[%s3 + $0x240] sm:$0xff] %v991
  %1286 = vst [vmem:[%s3 + $0x248] sm:$0xff] %v994
  %1287 = vst [vmem:[%s3 + $0x250] sm:$0xff] %v999
  %1288 = vst [vmem:[%s3 + $0x258] sm:$0xff] %v1002
  %1289 = vst [vmem:[%s3 + $0x260] sm:$0xff] %v1007
  %1290 = vst [vmem:[%s3 + $0x268] sm:$0xff] %v1010
  %1291 = vst [vmem:[%s3 + $0x270] sm:$0xff] %v1015
  %1292 = vst [vmem:[%s3 + $0x278] sm:$0xff] %v1018
  %1293 = vst [vmem:[%s3 + $0x280] sm:$0xff] %v1023
  %1294 = vst [vmem:[%s3 + $0x288] sm:$0xff] %v1026
  %1295 = vst [vmem:[%s3 + $0x290] sm:$0xff] %v1031
  %1296 = vst [vmem:[%s3 + $0x298] sm:$0xff] %v1034
  %1297 = vst [vmem:[%s3 + $0x2a0] sm:$0xff] %v1039
  %1298 = vst [vmem:[%s3 + $0x2a8] sm:$0xff] %v1042
  %1299 = vst [vmem:[%s3 + $0x2b0] sm:$0xff] %v1047
  %1300 = vst [vmem:[%s3 + $0x2b8] sm:$0xff] %v1050
  %1301 = vst [vmem:[%s3 + $0x2c0] sm:$0xff] %v1055
  %1302 = vst [vmem:[%s3 + $0x2c8] sm:$0xff] %v1058
  %1303 = vst [vmem:[%s3 + $0x2d0] sm:$0xff] %v1063
  %1304 = vst [vmem:[%s3 + $0x2d8] sm:$0xff] %v1066
  %1305 = vst [vmem:[%s3 + $0x2e0] sm:$0xff] %v1071
  %1306 = vst [vmem:[%s3 + $0x2e8] sm:$0xff] %v1074
  %1307 = vst [vmem:[%s3 + $0x2f0] sm:$0xff] %v1079
  %1308 = vst [vmem:[%s3 + $0x2f8] sm:$0xff] %v1082
  %1309 = vst [vmem:[%s3 + $0x300] sm:$0xff] %v1087
  %1310 = vst [vmem:[%s3 + $0x308] sm:$0xff] %v1090
  %1311 = vst [vmem:[%s3 + $0x310] sm:$0xff] %v1095
  %1312 = vst [vmem:[%s3 + $0x318] sm:$0xff] %v1098
  %1313 = vst [vmem:[%s3 + $0x320] sm:$0xff] %v1103
  %1314 = vst [vmem:[%s3 + $0x328] sm:$0xff] %v1106
  %1315 = vst [vmem:[%s3 + $0x330] sm:$0xff] %v1111
  %1316 = vst [vmem:[%s3 + $0x338] sm:$0xff] %v1114
  %1317 = vst [vmem:[%s3 + $0x340] sm:$0xff] %v1119
  %1318 = vst [vmem:[%s3 + $0x348] sm:$0xff] %v1122
  %1319 = vst [vmem:[%s3 + $0x350] sm:$0xff] %v1127
  %1320 = vst [vmem:[%s3 + $0x358] sm:$0xff] %v1130
  %1321 = vst [vmem:[%s3 + $0x360] sm:$0xff] %v1135
  %1322 = vst [vmem:[%s3 + $0x368] sm:$0xff] %v1138
  %1323 = vst [vmem:[%s3 + $0x370] sm:$0xff] %v1143
  %1324 = vst [vmem:[%s3 + $0x378] sm:$0xff] %v1146
  %1325 = vst [vmem:[%s3 + $0x380] sm:$0xff] %v1151
  %1326 = vst [vmem:[%s3 + $0x388] sm:$0xff] %v1154
  %1327 = vst [vmem:[%s3 + $0x390] sm:$0xff] %v1159
  %1328 = vst [vmem:[%s3 + $0x398] sm:$0xff] %v1162
  %1329 = vst [vmem:[%s3 + $0x3a0] sm:$0xff] %v1167
  %1330 = vst [vmem:[%s3 + $0x3a8] sm:$0xff] %v1170
  %1331 = vst [vmem:[%s3 + $0x3b0] sm:$0xff] %v1175
  %1332 = vst [vmem:[%s3 + $0x3b8] sm:$0xff] %v1178
  %1333 = vst [vmem:[%s3 + $0x3c0] sm:$0xff] %v1183
  %1334 = vst [vmem:[%s3 + $0x3c8] sm:$0xff] %v1186
  %1335 = vst [vmem:[%s3 + $0x3d0] sm:$0xff] %v1191
  %1336 = vst [vmem:[%s3 + $0x3d8] sm:$0xff] %v1194
  %1337 = vst [vmem:[%s3 + $0x3e0] sm:$0xff] %v1199
  %1338 = vst [vmem:[%s3 + $0x3e8] sm:$0xff] %v1202
  %1339 = vst [vmem:[%s3 + $0x3f0] sm:$0xff] %v1207
  %1340 = vst [vmem:[%s3 + $0x3f8] sm:$0xff] %v1210
  // Predicated region
  $region14: #{up_conv_forward.1} parent=0 // pred_check
    _
  $region15: #{up_conv_forward.1} parent=0 // pred_check_branch
    %1342 = sbr.rel (0) target = $region17
  $region16: #{up_conv_forward.1} parent=0 // pred_region
    _
  $region17: #{up_conv_forward.1} parent=0 // pred_fallthru
    _
  // Predicated region
  $region18: #{up_conv_forward.1} parent=0 // pred_check
    _
  $region19: #{up_conv_forward.1} parent=0 // pred_check_branch
    %1344 = sbr.rel (0) target = $region21
  $region20: #{up_conv_forward.1} parent=0 // pred_region
    _
  $region21: #{up_conv_forward.1} parent=0 // pred_fallthru
    _

</llo_original>
